<compile_context>
chip_gen: v7x
topology: tpu7x:2x2x1
jax: 0.10.0
libtpu: 0.0.40
codegen_flags: <defaults>
</compile_context>

<pallas_src>
import functools

import jax
import jax.numpy as jnp
from jax import lax
from jax.experimental import pallas as pl
from jax.experimental.pallas import tpu as pltpu

_LANE = 128


def _round_up(x, m):
    return ((x + m - 1) // m) * m


def _vmem_input_budget_bytes():
    """Generation-aware budget for the double-buffered streaming inputs."""
    cap = None
    try:
        info = pltpu.get_tpu_info()
        cap = getattr(info, "vmem_capacity_bytes", None)
    except Exception:
        cap = None
    if not cap:
        cap = 64 * 1024 * 1024  # conservative: assume smallest (v7x per-TC)
    # ~1/4 of physical VMEM: 32 MiB on v5e/v6e (128 MiB), 16 MiB on v7x (64 MiB).
    return max(8 * 1024 * 1024, min(48 * 1024 * 1024, cap // 4))


def _choose_tiling(hw, bc, itemsize, budget, n_split):
    """Pick (tile_size, tiles_per_split, n_split, need_mask) -- no HBM padding."""
    if hw <= _LANE:
        return hw, 1, 1, False
    in_rows = _round_up(bc, max(8, 32 // itemsize))          # sublane padding
    ts_cap = budget // (2 * 2 * in_rows * itemsize)          # 2 inputs x 2 buffers
    ts_cap = max(_LANE, (ts_cap // _LANE) * _LANE)
    ts_cap = min(ts_cap, _round_up(-(-hw // n_split), _LANE))

    # 1) exact tiling: hw % ts == 0 and tiles split evenly across cores.
    ts = ts_cap
    while ts >= _LANE:
        if hw % ts == 0 and (hw // ts) % n_split == 0:
            if 2 * ts >= ts_cap:            # never accept a tiny divisor tile
                return ts, hw // ts // n_split, n_split, False
            break
        ts -= _LANE
    # 2) masked tail: cdiv(hw, ts) splits evenly; last tile masked in-kernel.
    ts = ts_cap
    while ts >= _LANE:
        nt = -(-hw // ts)
        if nt % n_split == 0:
            return ts, nt // n_split, n_split, (hw % ts != 0)
        ts -= _LANE
    # 3) single-stream fallback.
    nt = -(-hw // ts_cap)
    return ts_cap, nt, 1, (hw % ts_cap != 0)


def _tanimoto_kernel(p_ref, l_ref, ol_ref, opl_ref, oppll_ref,
                     acc_l, acc_pl, acc_ppll, *, hw, kt, need_mask):
    k = pl.program_id(1)

    @pl.when(k == 0)
    def _init():
        acc_l[...] = jnp.zeros_like(acc_l)
        acc_pl[...] = jnp.zeros_like(acc_pl)
        acc_ppll[...] = jnp.zeros_like(acc_ppll)

    rows = p_ref.shape[0]
    ts = p_ref.shape[1]
    cw = acc_l.shape[1]
    n_chunks = ts // cw

    if need_mask:
        tile_start = (pl.program_id(0) * kt + k) * ts
        lane = lax.broadcasted_iota(jnp.int32, (1, cw), 1)

    def chunk_terms(row_sl, lo):
        pj = p_ref[row_sl, pl.ds(lo, cw)].astype(jnp.float32)
        lj = l_ref[row_sl, pl.ds(lo, cw)].astype(jnp.float32)
        if need_mask:
            valid = lane < (hw - tile_start - lo)      # exact-zero overhang
            pj = jnp.where(valid, pj, 0.0)
            lj = jnp.where(valid, lj, 0.0)
        return lj, pj * lj, pj * pj + lj * lj

    # Row-blocking keeps live vregs bounded for large b*c.
    rb = rows if rows <= 32 else 16
    for r0 in range(0, rows, rb):
        nrows = min(rb, rows - r0)
        row_sl = pl.ds(r0, nrows)
        if n_chunks <= 8:
            part = chunk_terms(row_sl, 0)
            for j in range(1, n_chunks):
                term = chunk_terms(row_sl, j * cw)
                part = tuple(a + t for a, t in zip(part, term))
        else:
            def body(j, carry):
                lo = pl.multiple_of(j * cw, cw)
                term = chunk_terms(row_sl, lo)
                return tuple(a + t for a, t in zip(carry, term))
            init = tuple(jnp.zeros((nrows, cw), jnp.float32) for _ in range(3))
            part = lax.fori_loop(0, n_chunks, body, init, unroll=8)
        acc_l[row_sl, :] += part[0]
        acc_pl[row_sl, :] += part[1]
        acc_ppll[row_sl, :] += part[2]

    # Per-split epilogue: one cross-lane reduce, tiny partial-sum outputs.
    @pl.when(k == pl.num_programs(1) - 1)
    def _finalize():
        ol_ref[0] = jnp.sum(acc_l[...], axis=-1, keepdims=True)
        opl_ref[0] = jnp.sum(acc_pl[...], axis=-1, keepdims=True)
        oppll_ref[0] = jnp.sum(acc_ppll[...], axis=-1, keepdims=True)


@jax.jit
def tanimoto_loss(y_pred, y):
    """Pallas TPU implementation of TanimotoLoss.forward.

    y_pred, y: (b, c, h, w) float arrays (f32 or bf16). Returns f32 scalar.
    """
    assert y_pred.shape == y.shape
    b, c, h, w = y_pred.shape
    bc, hw = b * c, h * w

    p2d = y_pred.reshape(bc, hw)    # free reshape, b-major rows
    l2d = y.reshape(bc, hw)

    itemsize = max(jnp.dtype(y_pred.dtype).itemsize, jnp.dtype(y.dtype).itemsize)
    budget = _vmem_input_budget_bytes()
    ts, kt, n_split, need_mask = _choose_tiling(hw, bc, itemsize, budget, n_split=2)
    cw = min(_LANE, ts)

    in_rows = _round_up(bc, max(8, 32 // itemsize))
    acc_rows = _round_up(bc, 8)
    vmem_limit = (2 * 2 * in_rows * ts * itemsize            # 2 inputs x 2 buffers
                  + 3 * acc_rows * _round_up(cw, _LANE) * 4  # accumulators
                  + (4 << 20))                               # outputs + headroom
    vmem_limit = int(min(max(vmem_limit, 32 << 20), 64 << 20))

    kernel = functools.partial(_tanimoto_kernel, hw=hw, kt=kt, need_mask=need_mask)

    out_sds = jax.ShapeDtypeStruct((n_split, bc, 1), jnp.float32)
    out_spec = pl.BlockSpec((1, bc, 1), lambda s, k: (s, 0, 0))

    parts_l, parts_pl, parts_ppll = pl.pallas_call(
        kernel,
        out_shape=(out_sds, out_sds, out_sds),
        grid_spec=pltpu.PrefetchScalarGridSpec(
            num_scalar_prefetch=0,
            grid=(n_split, kt),
            in_specs=[
                pl.BlockSpec((bc, ts), lambda s, k: (0, s * kt + k)),
                pl.BlockSpec((bc, ts), lambda s, k: (0, s * kt + k)),
            ],
            out_specs=[out_spec, out_spec, out_spec],
            scratch_shapes=[pltpu.VMEM((bc, cw), jnp.float32)] * 3,
        ),
        compiler_params=pltpu.CompilerParams(
            dimension_semantics=("parallel", "arbitrary"),
            vmem_limit_bytes=vmem_limit,
        ),
    )(p2d, l2d)

    # ~30-FLOP weight / scalar epilogue in plain JAX (outside the kernel).
    sum_l = jnp.sum(parts_l, axis=0)[:, 0].reshape(b, c)
    sum_pl = jnp.sum(parts_pl, axis=0)[:, 0].reshape(b, c)
    sum_ppll = jnp.sum(parts_ppll, axis=0)[:, 0].reshape(b, c)

    eps = jnp.float32(1e-07)
    V = jnp.mean(sum_l, axis=0)                              # (c,)
    wgt = V ** (-2.0)
    is_inf = wgt == jnp.inf
    new_w = jnp.where(is_inf, jnp.zeros_like(wgt), wgt)
    wgt = jnp.where(is_inf, jnp.full_like(wgt, jnp.max(new_w)), wgt)
    num = jnp.sum(wgt * sum_pl)
    den = jnp.sum(wgt * (sum_ppll - sum_pl))
    return 1.0 - num / (den + eps)


def _tanimoto_loss_ref(y_pred, y):
    """Pure-JAX reference mirroring the PyTorch module (for sanity check)."""
    p, l = y_pred.astype(jnp.float32), y.astype(jnp.float32)
    eps = 1e-07
    V = jnp.mean(jnp.sum(l, axis=(2, 3)), axis=0)
    w = V ** (-2.0)
    is_inf = w == jnp.inf
    new_w = jnp.where(is_inf, jnp.zeros_like(w), w)
    w = jnp.where(is_inf, jnp.ones_like(w) * jnp.max(new_w), w)
    sum_pl = jnp.sum(p * l, axis=(2, 3))
    numerator = jnp.sum(w * sum_pl)
    sum_p2_l2 = jnp.sum(p ** 2 + l ** 2, axis=(2, 3))
    denominator = jnp.sum(w * (sum_p2_l2 - sum_pl))
    return 1.0 - numerator / (denominator + eps)


if __name__ == "__main__":
    key = jax.random.PRNGKey(0)

    def make_inputs(k, b, c, h, w):
        k1, k2 = jax.random.split(k)
        labels = jax.random.randint(k1, (b, h, w), 0, c)
        y = jax.nn.one_hot(labels, c, dtype=jnp.float32)     # (b, h, w, c)
        y = jnp.transpose(y, (0, 3, 1, 2))                   # (b, c, h, w)
        logits = jax.random.normal(k2, (b, c, h, w), dtype=jnp.float32)
        return jax.nn.softmax(logits, axis=1), y

    shapes = [
        (2, 4, 16, 16),   # exact tiling (no mask), 2-way split
        (1, 3, 9, 15),    # non-tile-divisible h*w -> in-kernel tail masking
        (2, 2, 48, 48),   # long tile -> fori_loop chunk path
    ]
    keys = jax.random.split(key, len(shapes))
    for shp, kk in zip(shapes, keys):
        y_pred, y = make_inputs(kk, *shp)
        loss = jax.block_until_ready(tanimoto_loss(y_pred, y))
        ref = _tanimoto_loss_ref(y_pred, y)
        assert jnp.allclose(loss, ref, rtol=1e-5, atol=1e-5), (shp, loss, ref)

    print("KERNEL_OK")
</pallas_src>

<mosaic_0001>
module attributes {stable_mosaic.version = 11 : i64} {
  func.func @_tanimoto_kernel(%arg0: i32, %arg1: i32, %arg2: memref<8x128xf32, #tpu.memory_space<vmem>>, %arg3: memref<8x128xf32, #tpu.memory_space<vmem>>, %arg4: memref<1x8x1xf32, #tpu.memory_space<vmem>>, %arg5: memref<1x8x1xf32, #tpu.memory_space<vmem>>, %arg6: memref<1x8x1xf32, #tpu.memory_space<vmem>>, %arg7: memref<8x128xf32, #tpu.memory_space<vmem>>, %arg8: memref<8x128xf32, #tpu.memory_space<vmem>>, %arg9: memref<8x128xf32, #tpu.memory_space<vmem>>) attributes {dimension_semantics = [#tpu.dimension_semantics<parallel>, #tpu.dimension_semantics<arbitrary>], iteration_bounds = array<i64: 2, 1>, scalar_prefetch = 0 : i64, scratch_operands = 3 : i64, tpu.core_type = #tpu.core_type<tc>, window_params = [{transform_indices = @transform_0, window_bounds = array<i64: 8, 128>}, {transform_indices = @transform_1, window_bounds = array<i64: 8, 128>}, {transform_indices = @transform_2, window_bounds = array<i64: 1, 8, 1>}, {transform_indices = @transform_3, window_bounds = array<i64: 1, 8, 1>}, {transform_indices = @transform_4, window_bounds = array<i64: 1, 8, 1>}]} {
    %c0_i32 = arith.constant 0 : i32
    %0 = arith.cmpi eq, %arg1, %c0_i32 : i32
    %1 = arith.extui %0 : i1 to i32
    %c0_i32_0 = arith.constant 0 : i32
    %2 = arith.cmpi ne, %1, %c0_i32_0 : i32
    scf.if %2 {
      %cst = arith.constant 0.000000e+00 : f32
      %21 = vector.broadcast %cst : f32 to vector<8x128xf32>
      %c0_18 = arith.constant 0 : index
      %c0_19 = arith.constant 0 : index
      %22 = vector.load %arg7[%c0_18, %c0_19] : memref<8x128xf32, #tpu.memory_space<vmem>>, vector<8x128xf32>
      tpu.vector_store %arg7[%c0_18, %c0_19], %21 {strides = array<i32>} : memref<8x128xf32, #tpu.memory_space<vmem>>, vector<8x128xf32>,
      %cst_20 = arith.constant 0.000000e+00 : f32
      %23 = vector.broadcast %cst_20 : f32 to vector<8x128xf32>
      %c0_21 = arith.constant 0 : index
      %c0_22 = arith.constant 0 : index
      %24 = vector.load %arg8[%c0_21, %c0_22] : memref<8x128xf32, #tpu.memory_space<vmem>>, vector<8x128xf32>
      tpu.vector_store %arg8[%c0_21, %c0_22], %23 {strides = array<i32>} : memref<8x128xf32, #tpu.memory_space<vmem>>, vector<8x128xf32>,
      %cst_23 = arith.constant 0.000000e+00 : f32
      %25 = vector.broadcast %cst_23 : f32 to vector<8x128xf32>
      %c0_24 = arith.constant 0 : index
      %c0_25 = arith.constant 0 : index
      %26 = vector.load %arg9[%c0_24, %c0_25] : memref<8x128xf32, #tpu.memory_space<vmem>>, vector<8x128xf32>
      tpu.vector_store %arg9[%c0_24, %c0_25], %25 {strides = array<i32>} : memref<8x128xf32, #tpu.memory_space<vmem>>, vector<8x128xf32>,
    } else {
    }
    %c0 = arith.constant 0 : index
    %c0_1 = arith.constant 0 : index
    %3 = vector.load %arg2[%c0, %c0_1] : memref<8x128xf32, #tpu.memory_space<vmem>>, vector<8x128xf32>
    %c0_2 = arith.constant 0 : index
    %c0_3 = arith.constant 0 : index
    %4 = vector.load %arg3[%c0_2, %c0_3] : memref<8x128xf32, #tpu.memory_space<vmem>>, vector<8x128xf32>
    %5 = arith.mulf %3, %4 : vector<8x128xf32>
    %6 = arith.mulf %3, %3 : vector<8x128xf32>
    %7 = arith.mulf %4, %4 : vector<8x128xf32>
    %8 = arith.addf %6, %7 : vector<8x128xf32>
    %c0_4 = arith.constant 0 : index
    %c0_5 = arith.constant 0 : index
    %9 = vector.load %arg7[%c0_4, %c0_5] : memref<8x128xf32, #tpu.memory_space<vmem>>, vector<8x128xf32>
    %10 = arith.addf %9, %4 : vector<8x128xf32>
    %c0_6 = arith.constant 0 : index
    %c0_7 = arith.constant 0 : index
    %11 = vector.load %arg7[%c0_6, %c0_7] : memref<8x128xf32, #tpu.memory_space<vmem>>, vector<8x128xf32>
    tpu.vector_store %arg7[%c0_6, %c0_7], %10 {strides = array<i32>} : memref<8x128xf32, #tpu.memory_space<vmem>>, vector<8x128xf32>,
    %c0_8 = arith.constant 0 : index
    %c0_9 = arith.constant 0 : index
    %12 = vector.load %arg8[%c0_8, %c0_9] : memref<8x128xf32, #tpu.memory_space<vmem>>, vector<8x128xf32>
    %13 = arith.addf %12, %5 : vector<8x128xf32>
    %c0_10 = arith.constant 0 : index
    %c0_11 = arith.constant 0 : index
    %14 = vector.load %arg8[%c0_10, %c0_11] : memref<8x128xf32, #tpu.memory_space<vmem>>, vector<8x128xf32>
    tpu.vector_store %arg8[%c0_10, %c0_11], %13 {strides = array<i32>} : memref<8x128xf32, #tpu.memory_space<vmem>>, vector<8x128xf32>,
    %c0_12 = arith.constant 0 : index
    %c0_13 = arith.constant 0 : index
    %15 = vector.load %arg9[%c0_12, %c0_13] : memref<8x128xf32, #tpu.memory_space<vmem>>, vector<8x128xf32>
    %16 = arith.addf %15, %8 : vector<8x128xf32>
    %c0_14 = arith.constant 0 : index
    %c0_15 = arith.constant 0 : index
    %17 = vector.load %arg9[%c0_14, %c0_15] : memref<8x128xf32, #tpu.memory_space<vmem>>, vector<8x128xf32>
    tpu.vector_store %arg9[%c0_14, %c0_15], %16 {strides = array<i32>} : memref<8x128xf32, #tpu.memory_space<vmem>>, vector<8x128xf32>,
    %c0_i32_16 = arith.constant 0 : i32
    %18 = arith.cmpi eq, %arg1, %c0_i32_16 : i32
    %19 = arith.extui %18 : i1 to i32
    %c0_i32_17 = arith.constant 0 : i32
    %20 = arith.cmpi ne, %19, %c0_i32_17 : i32
    scf.if %20 {
      %c0_18 = arith.constant 0 : index
      %c0_19 = arith.constant 0 : index
      %21 = vector.load %arg7[%c0_18, %c0_19] : memref<8x128xf32, #tpu.memory_space<vmem>>, vector<8x128xf32>
      %cst = arith.constant dense<0.000000e+00> : vector<8xf32>
      %22 = vector.multi_reduction <add>, %21, %cst [1] : vector<8x128xf32> to vector<8xf32>
      %23 = vector.shape_cast %22 : vector<8xf32> to vector<8x1xf32>
      %c0_20 = arith.constant 0 : index
      %c0_21 = arith.constant 0 : index
      %c0_22 = arith.constant 0 : index
      %24 = vector.load %arg4[%c0_20, %c0_21, %c0_22] : memref<1x8x1xf32, #tpu.memory_space<vmem>>, vector<1x8x1xf32>
      %25 = vector.shape_cast %24 : vector<1x8x1xf32> to vector<8x1xf32>
      %26 = vector.shape_cast %23 : vector<8x1xf32> to vector<1x8x1xf32>
      tpu.vector_store %arg4[%c0_20, %c0_21, %c0_22], %26 {strides = array<i32>} : memref<1x8x1xf32, #tpu.memory_space<vmem>>, vector<1x8x1xf32>,
      %c0_23 = arith.constant 0 : index
      %c0_24 = arith.constant 0 : index
      %27 = vector.load %arg8[%c0_23, %c0_24] : memref<8x128xf32, #tpu.memory_space<vmem>>, vector<8x128xf32>
      %cst_25 = arith.constant dense<0.000000e+00> : vector<8xf32>
      %28 = vector.multi_reduction <add>, %27, %cst_25 [1] : vector<8x128xf32> to vector<8xf32>
      %29 = vector.shape_cast %28 : vector<8xf32> to vector<8x1xf32>
      %c0_26 = arith.constant 0 : index
      %c0_27 = arith.constant 0 : index
      %c0_28 = arith.constant 0 : index
      %30 = vector.load %arg5[%c0_26, %c0_27, %c0_28] : memref<1x8x1xf32, #tpu.memory_space<vmem>>, vector<1x8x1xf32>
      %31 = vector.shape_cast %30 : vector<1x8x1xf32> to vector<8x1xf32>
      %32 = vector.shape_cast %29 : vector<8x1xf32> to vector<1x8x1xf32>
      tpu.vector_store %arg5[%c0_26, %c0_27, %c0_28], %32 {strides = array<i32>} : memref<1x8x1xf32, #tpu.memory_space<vmem>>, vector<1x8x1xf32>,
      %c0_29 = arith.constant 0 : index
      %c0_30 = arith.constant 0 : index
      %33 = vector.load %arg9[%c0_29, %c0_30] : memref<8x128xf32, #tpu.memory_space<vmem>>, vector<8x128xf32>
      %cst_31 = arith.constant dense<0.000000e+00> : vector<8xf32>
      %34 = vector.multi_reduction <add>, %33, %cst_31 [1] : vector<8x128xf32> to vector<8xf32>
      %35 = vector.shape_cast %34 : vector<8xf32> to vector<8x1xf32>
      %c0_32 = arith.constant 0 : index
      %c0_33 = arith.constant 0 : index
      %c0_34 = arith.constant 0 : index
      %36 = vector.load %arg6[%c0_32, %c0_33, %c0_34] : memref<1x8x1xf32, #tpu.memory_space<vmem>>, vector<1x8x1xf32>
      %37 = vector.shape_cast %36 : vector<1x8x1xf32> to vector<8x1xf32>
      %38 = vector.shape_cast %35 : vector<8x1xf32> to vector<1x8x1xf32>
      tpu.vector_store %arg6[%c0_32, %c0_33, %c0_34], %38 {strides = array<i32>} : memref<1x8x1xf32, #tpu.memory_space<vmem>>, vector<1x8x1xf32>,
    } else {
    }
    return
  }
  func.func @transform_0(%arg0: i32, %arg1: i32) -> (i32, i32) {
    %c1_i32 = arith.constant 1 : i32
    %0 = arith.muli %arg0, %c1_i32 : i32
    %1 = arith.addi %0, %arg1 : i32
    %c0_i32 = arith.constant 0 : i32
    %c0_i32_0 = arith.constant 0 : i32
    return %c0_i32, %1 : i32, i32
  }
  func.func @transform_1(%arg0: i32, %arg1: i32) -> (i32, i32) {
    %c1_i32 = arith.constant 1 : i32
    %0 = arith.muli %arg0, %c1_i32 : i32
    %1 = arith.addi %0, %arg1 : i32
    %c0_i32 = arith.constant 0 : i32
    %c0_i32_0 = arith.constant 0 : i32
    return %c0_i32, %1 : i32, i32
  }
  func.func @transform_2(%arg0: i32, %arg1: i32) -> (i32, i32, i32) {
    %c0_i32 = arith.constant 0 : i32
    %c0_i32_0 = arith.constant 0 : i32
    %c0_i32_1 = arith.constant 0 : i32
    return %arg0, %c0_i32, %c0_i32_0 : i32, i32, i32
  }
  func.func @transform_3(%arg0: i32, %arg1: i32) -> (i32, i32, i32) {
    %c0_i32 = arith.constant 0 : i32
    %c0_i32_0 = arith.constant 0 : i32
    %c0_i32_1 = arith.constant 0 : i32
    return %arg0, %c0_i32, %c0_i32_0 : i32, i32, i32
  }
  func.func @transform_4(%arg0: i32, %arg1: i32) -> (i32, i32, i32) {
    %c0_i32 = arith.constant 0 : i32
    %c0_i32_0 = arith.constant 0 : i32
    %c0_i32_1 = arith.constant 0 : i32
    return %arg0, %c0_i32, %c0_i32_0 : i32, i32, i32
  }
}

</mosaic_0001>

<llo_original>
// kernel: squeeze.3
$region0: #{squeeze.3}
  %s0 = inlined_call_operand.vmem [shape: f32[8], index: 0, kind: input, shape index: {}]
  %s1 = inlined_call_operand.vmem [shape: f32[2,4], index: 1, kind: output, shape index: {}]
  $region1: #{squeeze.3} parent=0
    #allocation0 [shape = 'u8[4096]{0}', space=vmem, size = 0x1000, scoped, tag = 'scoped mem for output reshape']
    #allocation1 [shape = 'u8[4096]{0}', space=vmem, size = 0x1000, scoped, tag = 'scoped mem for input reshape']
    %s3 = sshllo.u32 0, 1
    %v4 = vld [vmem:[%s0] sm:%s3]
    %5 = vst [vmem:[#allocation1] sm:%s3] %v4
    %v6 = vld [vmem:[#allocation1] sm:$0x1]
    %vm7 = vcmask 31744
    %8 = vst.msk [vmem:[#allocation0] sm:$0x1] %vm7, %v6
    %v9 = vld [vmem:[#allocation1] sm:$0x1]
    %10 = vrot.lane.b32.xlu0 %v9, 124
    %v11 = vpop.permute.xlu0 %10
    %vm12 = vcmask 31744
    %s13 = scalar_lea.vmem [#allocation0], 1
    %14 = vst.msk [vmem:[%s13] sm:$0x1] %vm12, %v11
    %s16 = sshllo.u32 0, 2
    %v18 = vld [vmem:[#allocation0] sm:%s16]
    %s19 = sshllo.u32 0, 2
    %20 = vst [vmem:[%s1] sm:%s19] %v18

// kernel: tanimoto_loss.1
$region0: #{tanimoto_loss.1}
  #allocation0 [shape = 'u32[]', space=smem, size = 0x4, offset = 0x4, fixed_abs, tag = 'smem constant byte address 0x4 - core index']
  #allocation1 [shape = 'u32[144,128]{1,0:T(1,128)}', space=vmem, size = 0x12000, scoped, tag = 'internal scratch']
  #allocation2 [shape = 'f32[8,128]{1,0:T(8,128)}', space=vmem, size = 0x1000, scoped, tag = 'scratch operand']
  #allocation3 [shape = 'f32[8,128]{1,0:T(8,128)}', space=vmem, size = 0x1000, scoped, tag = 'scratch operand']
  #allocation4 [shape = 'f32[8,128]{1,0:T(8,128)}', space=vmem, size = 0x1000, scoped, tag = 'scratch operand']
  %s0 = inlined_call_operand.vmem [shape: f32[8,256], index: 0, kind: input, shape index: {}]
  %s1 = inlined_call_operand.vmem [shape: f32[8,256], index: 1, kind: input, shape index: {}]
  %s2 = inlined_call_operand.vmem [shape: f32[2,8,1], index: 2, kind: output, shape index: {0}]
  %s3 = inlined_call_operand.vmem [shape: f32[2,8,1], index: 3, kind: output, shape index: {1}]
  %s4 = inlined_call_operand.vmem [shape: f32[2,8,1], index: 4, kind: output, shape index: {2}]
  %5 = xla_tuple %s2, %s3, %s4
  %s6 = sld [smem:[#allocation0]]
  $region65: #{tanimoto_loss.1} parent=0
    _
  %s8 = ssub.s32 1, %s6
  %s9 = scalar_select 0, %s8, %s6
  loop: start=0, step=1, limit=4
  $region2: #{tanimoto_loss.1} parent=0 // loop_pre_header
    _
  $region3: #{tanimoto_loss.1} parent=0 // loop_header
    %s11 = sphi 0, %s15
    %p12 = scmp.ge.s32.totalorder %s11, 4
    %s18 = sphi 0, %s30
    %s19 = sphi 0, %s26
    %s20 = sphi 0, %s18
    %s21 = sphi 0, %s19
    %s22 = sphi 0, %s20
    %s23 = sphi 0, %s21
    %s35 = sphi 0, %s37
    %s38 = sphi 0, %s35
    %s39 = sphi 0, %s38
    %s55 = sphi 0, %s39
    %s63 = sphi 0, %s65
    %s66 = sphi 0, %s63
    %s67 = sphi 0, %s66
    %s83 = sphi 0, %s67
    %s89 = sphi 0, %s91
    %s92 = sphi 0, %s89
    %s93 = sphi 0, %s92
    %s109 = sphi 0, %s93
    %s115 = sphi 0, %s117
    %s118 = sphi 0, %s115
    %s119 = sphi 0, %s118
    %s135 = sphi 0, %s119
    %s141 = sphi 0, %s143
    %s144 = sphi 0, %s141
    %s145 = sphi 0, %s144
    %s161 = sphi 0, %s145
  $region4: #{tanimoto_loss.1} parent=0 // loop_header_branch
    %14 = sbr.rel (%p12) target = $region8
  $region5: #{tanimoto_loss.1} parent=0 // loop_body
    %s16 = ssub.s32 %s11, 1
    %s17 = ssub.s32 %s11, 2
    %s24 = sadd.s32 1, %s19
    %p25 = scmp.ge.s32.totalorder %s24, 1
    %s26 = scalar_select %p25, 0, %s24
    %s27 = sadd.s32 1, %s18
    %s28 = scalar_select %p25, %s27, %s18
    %p29 = scmp.ge.s32.totalorder %s28, 2
    %s30 = scalar_select %p29, 0, %s28
    %s31 = sadd.s32 %s18, %s19
    %s32 = sadd.s32 %s30, %s26
    %s33 = ssub.s32 %s31, %s32
    %p34 = scmp.eq.s32.totalorder %s33, 0
    %s36 = sadd.s32 %s35, 1
    %s37 = scalar_select %p34, %s35, %s36
    %p40 = pneg %p34
    %p41 = scmp.eq.s32.totalorder %s11, 1
    %p42 = por %p40, %p41
    %p43 = scmp.ne.s32.totalorder %s35, %s38
    %p44 = scmp.eq.s32.totalorder %s11, 0
    %p45 = por %p43, %p44
    %p46 = scmp.ne.s32.totalorder %s35, %s38
    %p47 = scmp.eq.s32.totalorder %s16, 1
    %p48 = por %p46, %p47
    %p49 = scmp.ne.s32.totalorder %s38, %s39
    %p50 = scmp.eq.s32.totalorder %s16, 0
    %p51 = por %p49, %p50
    %p52 = scmp.ne.s32.totalorder %s38, %s39
    %p53 = scmp.eq.s32.totalorder %s17, 1
    %p54 = por %p52, %p53
    %p56 = scmp.ne.s32.totalorder %s39, %s55
    %p57 = scmp.eq.s32.totalorder %s17, 0
    %p58 = por %p56, %p57
    %s59 = sadd.s32 %s18, %s19
    %s60 = sadd.s32 %s30, %s26
    %s61 = ssub.s32 %s59, %s60
    %p62 = scmp.eq.s32.totalorder %s61, 0
    %s64 = sadd.s32 %s63, 1
    %s65 = scalar_select %p62, %s63, %s64
    %p68 = pneg %p62
    %p69 = scmp.eq.s32.totalorder %s11, 1
    %p70 = por %p68, %p69
    %p71 = scmp.ne.s32.totalorder %s63, %s66
    %p72 = scmp.eq.s32.totalorder %s11, 0
    %p73 = por %p71, %p72
    %p74 = scmp.ne.s32.totalorder %s63, %s66
    %p75 = scmp.eq.s32.totalorder %s16, 1
    %p76 = por %p74, %p75
    %p77 = scmp.ne.s32.totalorder %s66, %s67
    %p78 = scmp.eq.s32.totalorder %s16, 0
    %p79 = por %p77, %p78
    %p80 = scmp.ne.s32.totalorder %s66, %s67
    %p81 = scmp.eq.s32.totalorder %s17, 1
    %p82 = por %p80, %p81
    %p84 = scmp.ne.s32.totalorder %s67, %s83
    %p85 = scmp.eq.s32.totalorder %s17, 0
    %p86 = por %p84, %p85
    %s87 = ssub.s32 %s18, %s30
    %p88 = scmp.eq.s32.totalorder %s87, 0
    %s90 = sadd.s32 %s89, 1
    %s91 = scalar_select %p88, %s89, %s90
    %p94 = pneg %p88
    %p95 = scmp.eq.s32.totalorder %s11, 1
    %p96 = por %p94, %p95
    %p97 = scmp.ne.s32.totalorder %s89, %s92
    %p98 = scmp.eq.s32.totalorder %s11, 0
    %p99 = por %p97, %p98
    %p100 = scmp.ne.s32.totalorder %s89, %s92
    %p101 = scmp.eq.s32.totalorder %s16, 1
    %p102 = por %p100, %p101
    %p103 = scmp.ne.s32.totalorder %s92, %s93
    %p104 = scmp.eq.s32.totalorder %s16, 0
    %p105 = por %p103, %p104
    %p106 = scmp.ne.s32.totalorder %s92, %s93
    %p107 = scmp.eq.s32.totalorder %s17, 1
    %p108 = por %p106, %p107
    %p110 = scmp.ne.s32.totalorder %s93, %s109
    %p111 = scmp.eq.s32.totalorder %s17, 0
    %p112 = por %p110, %p111
    %s113 = ssub.s32 %s18, %s30
    %p114 = scmp.eq.s32.totalorder %s113, 0
    %s116 = sadd.s32 %s115, 1
    %s117 = scalar_select %p114, %s115, %s116
    %p120 = pneg %p114
    %p121 = scmp.eq.s32.totalorder %s11, 1
    %p122 = por %p120, %p121
    %p123 = scmp.ne.s32.totalorder %s115, %s118
    %p124 = scmp.eq.s32.totalorder %s11, 0
    %p125 = por %p123, %p124
    %p126 = scmp.ne.s32.totalorder %s115, %s118
    %p127 = scmp.eq.s32.totalorder %s16, 1
    %p128 = por %p126, %p127
    %p129 = scmp.ne.s32.totalorder %s118, %s119
    %p130 = scmp.eq.s32.totalorder %s16, 0
    %p131 = por %p129, %p130
    %p132 = scmp.ne.s32.totalorder %s118, %s119
    %p133 = scmp.eq.s32.totalorder %s17, 1
    %p134 = por %p132, %p133
    %p136 = scmp.ne.s32.totalorder %s119, %s135
    %p137 = scmp.eq.s32.totalorder %s17, 0
    %p138 = por %p136, %p137
    %s139 = ssub.s32 %s18, %s30
    %p140 = scmp.eq.s32.totalorder %s139, 0
    %s142 = sadd.s32 %s141, 1
    %s143 = scalar_select %p140, %s141, %s142
    %p146 = pneg %p140
    %p147 = scmp.eq.s32.totalorder %s11, 1
    %p148 = por %p146, %p147
    %p149 = scmp.ne.s32.totalorder %s141, %s144
    %p150 = scmp.eq.s32.totalorder %s11, 0
    %p151 = por %p149, %p150
    %p152 = scmp.ne.s32.totalorder %s141, %s144
    %p153 = scmp.eq.s32.totalorder %s16, 1
    %p154 = por %p152, %p153
    %p155 = scmp.ne.s32.totalorder %s144, %s145
    %p156 = scmp.eq.s32.totalorder %s16, 0
    %p157 = por %p155, %p156
    %p158 = scmp.ne.s32.totalorder %s144, %s145
    %p159 = scmp.eq.s32.totalorder %s17, 1
    %p160 = por %p158, %p159
    %p162 = scmp.ne.s32.totalorder %s145, %s161
    %p163 = scmp.eq.s32.totalorder %s17, 0
    %p164 = por %p162, %p163
    %p165 = scmp.le.s32.totalorder 1, %s11
    %p166 = scmp.lt.s32.totalorder %s11, 3
    %p167 = pnand %p165, %p166
    %p168 = pneg %p167
    // Predicated region
    $region9: #{tanimoto_loss.1} parent=5 // pred_check
      _
    $region10: #{tanimoto_loss.1} parent=5 // pred_check_branch
      %170 = sbr.rel (%p167) target = $region12
    $region11: #{tanimoto_loss.1} parent=5 // pred_region
      %s171 = ssub.s32 %s11, 1
    $region12: #{tanimoto_loss.1} parent=5 // pred_fallthru
      _
    %p172 = scmp.lt.s32.totalorder %s11, 2
    // Predicated region
    $region13: #{tanimoto_loss.1} parent=5 // pred_check
      %p173 = pneg %p172
    $region14: #{tanimoto_loss.1} parent=5 // pred_check_branch
      %175 = sbr.rel (%p173) target = $region16
    $region15: #{tanimoto_loss.1} parent=5 // pred_region
      // Predicated region
      $region17: #{tanimoto_loss.1} parent=15 // pred_check
        %p176 = pneg %p45
      $region18: #{tanimoto_loss.1} parent=15 // pred_check_branch
        %178 = sbr.rel (%p176) target = $region20
      $region19: #{tanimoto_loss.1} parent=15 // pred_region
        %s179 = sadd.s32 %s18, %s19
        %p180 = scmp.lt.s32.totalorder %s179, 1
        %s181 = scalar_select %p180, %s179, 1
        %s182 = smul.addr %s181, 8
        %s183 = scalar_lea.vmem %s0, %s182
        %s184 = sadd.s32 %s18, %s19
      $region20: #{tanimoto_loss.1} parent=15 // pred_fallthru
        _
      // Predicated region
      $region21: #{tanimoto_loss.1} parent=15 // pred_check
        %p185 = pneg %p73
      $region22: #{tanimoto_loss.1} parent=15 // pred_check_branch
        %187 = sbr.rel (%p185) target = $region24
      $region23: #{tanimoto_loss.1} parent=15 // pred_region
        %s188 = sadd.s32 %s18, %s19
        %p189 = scmp.lt.s32.totalorder %s188, 1
        %s190 = scalar_select %p189, %s188, 1
        %s191 = smul.addr %s190, 8
        %s192 = scalar_lea.vmem %s1, %s191
        %s193 = sadd.s32 %s18, %s19
      $region24: #{tanimoto_loss.1} parent=15 // pred_fallthru
        _
    $region16: #{tanimoto_loss.1} parent=5 // pred_fallthru
      _
    %p194 = scmp.le.s32.totalorder 1, %s11
    %p195 = scmp.lt.s32.totalorder %s11, 3
    %p196 = pnand %p194, %p195
    %p197 = pneg %p196
    // Predicated region
    $region25: #{tanimoto_loss.1} parent=5 // pred_check
      _
    $region26: #{tanimoto_loss.1} parent=5 // pred_check_branch
      %199 = sbr.rel (%p196) target = $region28
    $region27: #{tanimoto_loss.1} parent=5 // pred_region
      %s200 = ssub.s32 %s11, 1
      %s201 = sadd.s32 %s20, %s21
      %p202 = scmp.lt.s32.totalorder %s201, 1
      %s203 = scalar_select %p202, %s201, 1
      %s204 = smul.addr %s203, 8
      %s205 = scalar_lea.vmem %s0, %s204
      %p206 = pneg %p51
      %p207 = pneg %p48
      %s208 = sadd.s32 %s20, %s21
      %p209 = scmp.lt.s32.totalorder %s208, 1
      %s210 = scalar_select %p209, %s208, 1
      %s211 = smul.addr %s210, 8
      %s212 = scalar_lea.vmem %s1, %s211
      %p213 = pneg %p79
      %p214 = pneg %p76
      %p215 = pneg %p105
      %p216 = pneg %p102
      %p217 = scmp.lt.s32.totalorder %s20, 1
      %s218 = scalar_select %p217, %s20, 1
      %s219 = smul.addr %s218, 8
      %s220 = scalar_lea.vmem %s2, %s219
      %p221 = pneg %p131
      %p222 = pneg %p128
      %p223 = scmp.lt.s32.totalorder %s20, 1
      %s224 = scalar_select %p223, %s20, 1
      %s225 = smul.addr %s224, 8
      %s226 = scalar_lea.vmem %s3, %s225
      %p227 = pneg %p157
      %p228 = pneg %p154
      %p229 = scmp.lt.s32.totalorder %s20, 1
      %s230 = scalar_select %p229, %s20, 1
      %s231 = smul.addr %s230, 8
      %s232 = scalar_lea.vmem %s4, %s231
      %s233 = sadd.s32 %s20, %s21
      %p234 = scmp.lt.s32.totalorder %s233, 1
      %s235 = scalar_select %p234, %s233, 1
      %s236 = smul.addr %s235, 8
      %s237 = scalar_lea.vmem %s0, %s236
      %s238 = sadd.s32 %s20, %s21
      %s239 = sadd.s32 %s20, %s21
      %p240 = scmp.lt.s32.totalorder %s239, 1
      %s241 = scalar_select %p240, %s239, 1
      %s242 = smul.addr %s241, 8
      %s243 = scalar_lea.vmem %s1, %s242
      %s244 = sadd.s32 %s20, %s21
      %p245 = scmp.lt.s32.totalorder %s20, 1
      %s246 = scalar_select %p245, %s20, 1
      %s247 = smul.addr %s246, 8
      %s248 = scalar_lea.vmem %s2, %s247
      %p249 = scmp.lt.s32.totalorder %s20, 1
      %s250 = scalar_select %p249, %s20, 1
      %s251 = smul.addr %s250, 8
      %s252 = scalar_lea.vmem %s3, %s251
      %p253 = scmp.lt.s32.totalorder %s20, 1
      %s254 = scalar_select %p253, %s20, 1
      %s255 = smul.addr %s254, 8
      %s256 = scalar_lea.vmem %s4, %s255
      %p257 = scmp.eq.s32.totalorder %s21, 0
      // Predicated region
      $region29: #{tanimoto_loss.1} parent=27 // pred_check
        %p258 = pneg %p257
      $region30: #{tanimoto_loss.1} parent=27 // pred_check_branch
        %260 = sbr.rel (%p258) target = $region32
      $region31: #{tanimoto_loss.1} parent=27 // pred_region
        %261 = vst [vmem:[#allocation2] sm:$0xff] 0.0
        %262 = vst [vmem:[#allocation3] sm:$0xff] 0.0
        %263 = vst [vmem:[#allocation4] sm:$0xff] 0.0
      $region32: #{tanimoto_loss.1} parent=27 // pred_fallthru
        _
      %v264 = vld [vmem:[%s237] sm:$0xff]
      %v265 = vld [vmem:[%s243] sm:$0xff]
      %v266 = vmul.f32 %v264, %v265
      %v267 = vmul.f32 %v264, %v264
      %v268 = vmul.f32 %v265, %v265
      %v269 = vadd.f32 %v267, %v268
      %v270 = vld [vmem:[#allocation2] sm:$0xff]
      %v271 = vadd.f32 %v270, %v265
      %272 = vst [vmem:[#allocation2] sm:$0xff] %v271
      %v273 = vld [vmem:[#allocation3] sm:$0xff]
      %v274 = vadd.f32 %v273, %v266
      %275 = vst [vmem:[#allocation3] sm:$0xff] %v274
      %v276 = vld [vmem:[#allocation4] sm:$0xff]
      %v277 = vadd.f32 %v276, %v269
      %278 = vst [vmem:[#allocation4] sm:$0xff] %v277
      // Predicated region
      $region33: #{tanimoto_loss.1} parent=27 // pred_check
        %p279 = pneg %p257
      $region34: #{tanimoto_loss.1} parent=27 // pred_check_branch
        %281 = sbr.rel (%p279) target = $region36
      $region35: #{tanimoto_loss.1} parent=27 // pred_region
        %v282 = vld [vmem:[#allocation2] sm:$0xff]
        %283 = vadd.xlane.f32.xlu0 %v282
        %v284 = vpop.xlane.xlu0 %283
        %vm285 = vcmask 7168
        %286 = vst.msk [vmem:[%s248] sm:$0xff] %vm285, %v284
        %v287 = vld [vmem:[#allocation3] sm:$0xff]
        %288 = vadd.xlane.f32.xlu0 %v287
        %v289 = vpop.xlane.xlu0 %288
        %290 = vst.msk [vmem:[%s252] sm:$0xff] %vm285, %v289
        %v291 = vld [vmem:[#allocation4] sm:$0xff]
        %292 = vadd.xlane.f32.xlu0 %v291
        %v293 = vpop.xlane.xlu0 %292
        %294 = vst.msk [vmem:[%s256] sm:$0xff] %vm285, %v293
      $region36: #{tanimoto_loss.1} parent=27 // pred_fallthru
        _
      %p295 = scmp.lt.s32.totalorder %s20, 1
      %s296 = scalar_select %p295, %s20, 1
      %s297 = smul.addr %s296, 8
      %s298 = scalar_lea.vmem %s2, %s297
      %p299 = scmp.lt.s32.totalorder %s20, 1
      %s300 = scalar_select %p299, %s20, 1
      %s301 = smul.addr %s300, 8
      %s302 = scalar_lea.vmem %s3, %s301
      %p303 = scmp.lt.s32.totalorder %s20, 1
      %s304 = scalar_select %p303, %s20, 1
      %s305 = smul.addr %s304, 8
      %s306 = scalar_lea.vmem %s4, %s305
      // Predicated region
      $region37: #{tanimoto_loss.1} parent=27 // pred_check
        %p307 = pneg %p102
      $region38: #{tanimoto_loss.1} parent=27 // pred_check_branch
        %309 = sbr.rel (%p307) target = $region40
      $region39: #{tanimoto_loss.1} parent=27 // pred_region
        _
      $region40: #{tanimoto_loss.1} parent=27 // pred_fallthru
        _
      // Predicated region
      $region41: #{tanimoto_loss.1} parent=27 // pred_check
        %p310 = pneg %p128
      $region42: #{tanimoto_loss.1} parent=27 // pred_check_branch
        %312 = sbr.rel (%p310) target = $region44
      $region43: #{tanimoto_loss.1} parent=27 // pred_region
        _
      $region44: #{tanimoto_loss.1} parent=27 // pred_fallthru
        _
      // Predicated region
      $region45: #{tanimoto_loss.1} parent=27 // pred_check
        %p313 = pneg %p154
      $region46: #{tanimoto_loss.1} parent=27 // pred_check_branch
        %315 = sbr.rel (%p313) target = $region48
      $region47: #{tanimoto_loss.1} parent=27 // pred_region
        _
      $region48: #{tanimoto_loss.1} parent=27 // pred_fallthru
        _
    $region28: #{tanimoto_loss.1} parent=5 // pred_fallthru
      _
    %p316 = scmp.le.s32.totalorder 2, %s11
    // Predicated region
    $region49: #{tanimoto_loss.1} parent=5 // pred_check
      %p317 = pneg %p316
    $region50: #{tanimoto_loss.1} parent=5 // pred_check_branch
      %319 = sbr.rel (%p317) target = $region52
    $region51: #{tanimoto_loss.1} parent=5 // pred_region
      %s320 = ssub.s32 %s11, 2
      // Predicated region
      $region53: #{tanimoto_loss.1} parent=51 // pred_check
        %p321 = pneg %p108
      $region54: #{tanimoto_loss.1} parent=51 // pred_check_branch
        %323 = sbr.rel (%p321) target = $region56
      $region55: #{tanimoto_loss.1} parent=51 // pred_region
        %p324 = scmp.lt.s32.totalorder %s22, 1
        %s325 = scalar_select %p324, %s22, 1
        %s326 = smul.addr %s325, 8
        %s327 = scalar_lea.vmem %s2, %s326
      $region56: #{tanimoto_loss.1} parent=51 // pred_fallthru
        _
      // Predicated region
      $region57: #{tanimoto_loss.1} parent=51 // pred_check
        %p328 = pneg %p134
      $region58: #{tanimoto_loss.1} parent=51 // pred_check_branch
        %330 = sbr.rel (%p328) target = $region60
      $region59: #{tanimoto_loss.1} parent=51 // pred_region
        %p331 = scmp.lt.s32.totalorder %s22, 1
        %s332 = scalar_select %p331, %s22, 1
        %s333 = smul.addr %s332, 8
        %s334 = scalar_lea.vmem %s3, %s333
      $region60: #{tanimoto_loss.1} parent=51 // pred_fallthru
        _
      // Predicated region
      $region61: #{tanimoto_loss.1} parent=51 // pred_check
        %p335 = pneg %p160
      $region62: #{tanimoto_loss.1} parent=51 // pred_check_branch
        %337 = sbr.rel (%p335) target = $region64
      $region63: #{tanimoto_loss.1} parent=51 // pred_region
        %p338 = scmp.lt.s32.totalorder %s22, 1
        %s339 = scalar_select %p338, %s22, 1
        %s340 = smul.addr %s339, 8
        %s341 = scalar_lea.vmem %s4, %s340
      $region64: #{tanimoto_loss.1} parent=51 // pred_fallthru
        _
    $region52: #{tanimoto_loss.1} parent=5 // pred_fallthru
      _
  $region6: #{tanimoto_loss.1} parent=0 // loop_footer
    %s15 = sadd.s32 1, %s11
  $region7: #{tanimoto_loss.1} parent=0 // loop_footer_branch
    %10 = sbr.rel target = $region3
  $region8: #{tanimoto_loss.1} parent=0 // loop_exit
    _

</llo_original>
